<compile_context>
chip_gen: v6e
topology: v6e:2x2x1
jax: 0.10.0
libtpu: 0.0.40
codegen_flags: <defaults>
</compile_context>

<pallas_src>
import functools

import jax
import jax.numpy as jnp
from jax.experimental import pallas as pl
from jax.experimental.pallas import tpu as pltpu


# ---------------------------------------------------------------------------
# Kernel
# ---------------------------------------------------------------------------
def _classification_head_kernel(x_ref, w_ref, b_ref, o_ref, *, compute_dtype):
    # x_ref: (TB, E)  activation's native dtype (usually f32)
    # w_ref: (E, TC)  bf16, single-buffered resident parameter
    # b_ref: (1, TC)  f32
    # o_ref: (TB, TC) out dtype
    #
    # Cast streamed activations to the MXU input dtype inside the kernel
    # (free VPU work in a mem-bound kernel) instead of a wrapper-level cast.
    x = x_ref[...].astype(compute_dtype)
    acc = jnp.dot(x, w_ref[...], preferred_element_type=jnp.float32)
    o_ref[...] = (acc + b_ref[...]).astype(o_ref.dtype)


# ---------------------------------------------------------------------------
# Tiling / VMEM planning
# ---------------------------------------------------------------------------
def _round_down(v, m):
    return (v // m) * m


def _round_up(v, m):
    return ((v + m - 1) // m) * m


def _vmem_budget_bytes():
    """Per-generation VMEM budget: never request the whole physical VMEM."""
    try:
        cap = int(pltpu.get_tpu_info().vmem_capacity_bytes)
    except Exception:
        cap = 64 << 20  # conservative fallback (v7x per-TensorCore VMEM)
    # Leave headroom for Mosaic internal scratch / compiler temporaries:
    #   128 MiB chips (v5e/v6e) -> ~102 MiB, 64 MiB chips (v7x) -> ~51 MiB.
    return int(min(cap - (12 << 20), cap * 4 // 5))


def _plan_tiles(B, E, Cp, x_bytes, out_bytes, w_bytes, budget):
    """Pick (tb, tc) from the VMEM budget.

    Accurate VMEM model (no double hedging):
      resident params (single-buffered): E*tc*w_bytes + tc*4
      streamed x tile  (double-buffered): 2 * tb * E  * x_bytes
      streamed out tile (double-buffered): 2 * tb * tc * out_bytes
    """
    headroom = 2 << 20

    # Shrink the class block until the resident weight leaves room for at
    # least a 16-row double-buffered activation/output tile (v7x guard).
    tc = Cp
    while True:
        resident = E * tc * w_bytes + tc * 4
        avail = budget - headroom - resident
        per_row = 2 * (E * x_bytes + tc * out_bytes)
        if (avail >= 16 * per_row) or tc <= 128:
            break
        tc = max(128, _round_down(tc // 2, 128))

    resident = E * tc * w_bytes + tc * 4
    avail = budget - headroom - resident
    per_row = 2 * (E * x_bytes + tc * out_bytes)
    tb_budget = max(8, avail // per_row) if avail > 0 else 8

    # Batch tile: large enough to amortize the ~0.35us/step overhead, but keep
    # >= 2 grid steps so both v7x TensorCores are used and pipelining overlaps.
    if B <= 16:
        tb = 8 if B == 16 else B            # full-dim block is always legal
    else:
        half = -(-B // 2)                   # ceil(B/2): at least 2 tiles
        tb = min(int(tb_budget), half, 2048)
        tb = max(16, _round_down(tb, 16))   # bf16 packs 16 rows per vreg
        tb = min(tb, _round_up(B, 16))
    return tb, tc


def _param_spec(block_shape, index_map):
    # Constant-block parameters are DMA'd once; single-buffer them to free
    # VMEM for larger activation tiles (matters most on v7x's 64 MiB).
    try:
        return pl.BlockSpec(block_shape, index_map, pipeline_mode=pl.Buffered(1))
    except TypeError:  # older jax without pipeline_mode support
        return pl.BlockSpec(block_shape, index_map)


# ---------------------------------------------------------------------------
# Forward
# ---------------------------------------------------------------------------
def classification_head_forward(hidden_state, w_ec, b_2d, class_size, *,
                                compute_dtype=jnp.bfloat16, out_dtype=None,
                                tb=None):
    """hidden_state: (B, E); w_ec: (E, Cp) pre-transposed/padded bf16; b_2d: (1, Cp) f32."""
    B, E = hidden_state.shape
    E_w, Cp = w_ec.shape
    assert E == E_w, "embed_size mismatch between activations and weight"
    assert Cp % 128 == 0, "class dim must be lane-padded at parameter prep"

    # Keep logits in the activation dtype by default.  For tiny class_size the
    # padded f32 output is a sizable share of HBM traffic; pass
    # out_dtype=jnp.bfloat16 if the downstream softmax tolerates it.
    if out_dtype is None:
        out_dtype = hidden_state.dtype

    x_bytes = jnp.dtype(hidden_state.dtype).itemsize
    o_bytes = jnp.dtype(out_dtype).itemsize
    w_bytes = jnp.dtype(w_ec.dtype).itemsize

    budget = _vmem_budget_bytes()
    tb_auto, tc = _plan_tiles(B, E, Cp, x_bytes, o_bytes, w_bytes, budget)
    if tb is None:
        tb = tb_auto
    tb = min(tb, B)

    n_b = pl.cdiv(B, tb)
    n_c = pl.cdiv(Cp, tc)
    grid = (n_b, n_c)

    # Accurate VMEM request: 1x weight + 1x bias + 2x x-tile + 2x out-tile.
    vmem_req = (E * tc * w_bytes + tc * 4
                + 2 * tb * E * x_bytes
                + 2 * tb * tc * o_bytes
                + (2 << 20))
    vmem_limit = int(min(max(vmem_req, 8 << 20), budget))

    kernel = functools.partial(_classification_head_kernel,
                               compute_dtype=compute_dtype)

    out_padded = pl.pallas_call(
        kernel,
        out_shape=jax.ShapeDtypeStruct((B, Cp), out_dtype),
        grid_spec=pl.GridSpec(
            grid=grid,
            in_specs=[
                pl.BlockSpec((tb, E), lambda i, j: (i, 0)),   # streamed x tile
                _param_spec((E, tc), lambda i, j: (0, j)),    # weight (resident)
                _param_spec((1, tc), lambda i, j: (0, j)),    # bias   (resident)
            ],
            out_specs=pl.BlockSpec((tb, tc), lambda i, j: (i, j)),
        ),
        compiler_params=pltpu.CompilerParams(
            dimension_semantics=("parallel", "parallel"),
            vmem_limit_bytes=vmem_limit,
        ),
    )(hidden_state, w_ec, b_2d)   # no wrapper-level cast: kernel casts on VPU

    # Lane-dense kernel output; logical class_size restored outside the kernel.
    return out_padded[:, :class_size]


class ClassificationHead:
    """JAX/Pallas equivalent of the PyTorch ClassificationHead.

    Parameter layout conversion (transpose to (E, C), lane padding to a
    multiple of 128, bf16 cast of the weight) is done ONCE here, not per call.
    """

    def __init__(self, weight, bias, *, compute_dtype=jnp.bfloat16,
                 lane_multiple=128):
        # weight: (class_size, embed_size) [torch Linear layout]; bias: (class_size,)
        C, E = weight.shape
        self.class_size = C
        self.embed_size = E
        self.compute_dtype = compute_dtype

        c_pad = _round_up(C, lane_multiple)
        w_ec = jnp.asarray(weight, compute_dtype).T                  # (E, C)
        self.w_ec = jnp.pad(w_ec, ((0, 0), (0, c_pad - C)))          # (E, Cp)
        b_f32 = jnp.asarray(bias, jnp.float32).reshape(1, C)
        self.b_2d = jnp.pad(b_f32, ((0, 0), (0, c_pad - C)))         # (1, Cp)

    def __call__(self, hidden_state, *, tb=None, out_dtype=None):
        return classification_head_forward(
            hidden_state, self.w_ec, self.b_2d, self.class_size,
            tb=tb, out_dtype=out_dtype, compute_dtype=self.compute_dtype)


if __name__ == "__main__":
    # Small shapes consistent with the module: batch of hidden states of size
    # embed_size projected to class_size logits.  batch=16 exercises a 2-step
    # batch grid (tiled + pipelined path), still tiny.
    batch, embed_size, class_size = 16, 32, 4

    key = jax.random.PRNGKey(0)
    k_x, k_w, k_b = jax.random.split(key, 3)

    hidden_state = jax.random.normal(k_x, (batch, embed_size), dtype=jnp.float32)
    # torch.nn.Linear parameter shapes: W (C, E), b (C,)
    weight = jax.random.normal(k_w, (class_size, embed_size), dtype=jnp.float32) * 0.02
    bias = jax.random.normal(k_b, (class_size,), dtype=jnp.float32) * 0.02

    head = ClassificationHead(weight, bias, compute_dtype=jnp.bfloat16)
    logits = head(hidden_state)
    logits = jax.block_until_ready(logits)

    # Reference: same bf16 operand rounding, f32 accumulation (pure JAX).
    x_ref = hidden_state.astype(jnp.bfloat16).astype(jnp.float32)
    w_ref = weight.astype(jnp.bfloat16).astype(jnp.float32)
    ref = x_ref @ w_ref.T + bias

    assert logits.shape == (batch, class_size)
    assert logits.dtype == hidden_state.dtype
    assert jnp.allclose(logits, ref, atol=1e-3, rtol=1e-3)

    print("KERNEL_OK")
</pallas_src>

<mosaic_0001>
module attributes {stable_mosaic.version = 11 : i64} {
  func.func @_classification_head_kernel(%arg0: i32, %arg1: i32, %arg2: memref<8x32xf32, #tpu.memory_space<vmem>>, %arg3: memref<32x128xbf16, #tpu.memory_space<vmem>>, %arg4: memref<1x128xf32, #tpu.memory_space<vmem>>, %arg5: memref<8x128xf32, #tpu.memory_space<vmem>>) attributes {dimension_semantics = [#tpu.dimension_semantics<parallel>, #tpu.dimension_semantics<parallel>], iteration_bounds = array<i64: 2, 1>, scalar_prefetch = 0 : i64, scratch_operands = 0 : i64, tpu.core_type = #tpu.core_type<tc>, window_params = [{transform_indices = @transform_0, window_bounds = array<i64: 8, 32>}, {pipeline_mode = #tpu.pipeline_mode<synchronous>, transform_indices = @transform_1, window_bounds = array<i64: 32, 128>}, {pipeline_mode = #tpu.pipeline_mode<synchronous>, transform_indices = @transform_2, window_bounds = array<i64: 1, 128>}, {transform_indices = @transform_3, window_bounds = array<i64: 8, 128>}]} {
    %c0 = arith.constant 0 : index
    %c0_0 = arith.constant 0 : index
    %0 = vector.load %arg2[%c0, %c0_0] : memref<8x32xf32, #tpu.memory_space<vmem>>, vector<8x32xf32>
    %1 = arith.truncf %0 : vector<8x32xf32> to vector<8x32xbf16>
    %c0_1 = arith.constant 0 : index
    %c0_2 = arith.constant 0 : index
    %2 = vector.load %arg3[%c0_1, %c0_2] : memref<32x128xbf16, #tpu.memory_space<vmem>>, vector<32x128xbf16>
    %cst = arith.constant dense<0.000000e+00> : vector<8x128xf32>
    %3 = tpu.matmul %1, %2, %cst {dimension_numbers = #tpu.dot_dimension_numbers<[1], [0], [0], [1], [0, 0, 1, 1], [], []>} : vector<8x32xbf16>, vector<32x128xbf16>, vector<8x128xf32> -> vector<8x128xf32>
    %c0_3 = arith.constant 0 : index
    %c0_4 = arith.constant 0 : index
    %4 = vector.load %arg4[%c0_3, %c0_4] : memref<1x128xf32, #tpu.memory_space<vmem>>, vector<1x128xf32>
    %5 = vector.broadcast %4 : vector<1x128xf32> to vector<8x128xf32>
    %6 = arith.addf %3, %5 : vector<8x128xf32>
    %c0_5 = arith.constant 0 : index
    %c0_6 = arith.constant 0 : index
    %7 = vector.load %arg5[%c0_5, %c0_6] : memref<8x128xf32, #tpu.memory_space<vmem>>, vector<8x128xf32>
    tpu.vector_store %arg5[%c0_5, %c0_6], %6 {strides = array<i32>} : memref<8x128xf32, #tpu.memory_space<vmem>>, vector<8x128xf32>,
    return
  }
  func.func @transform_0(%arg0: i32, %arg1: i32) -> (i32, i32) {
    %c0_i32 = arith.constant 0 : i32
    %c0_i32_0 = arith.constant 0 : i32
    return %arg0, %c0_i32 : i32, i32
  }
  func.func @transform_1(%arg0: i32, %arg1: i32) -> (i32, i32) {
    %c0_i32 = arith.constant 0 : i32
    %c0_i32_0 = arith.constant 0 : i32
    return %c0_i32, %arg1 : i32, i32
  }
  func.func @transform_2(%arg0: i32, %arg1: i32) -> (i32, i32) {
    %c0_i32 = arith.constant 0 : i32
    %c0_i32_0 = arith.constant 0 : i32
    return %c0_i32, %arg1 : i32, i32
  }
  func.func @transform_3(%arg0: i32, %arg1: i32) -> (i32, i32) {
    %c0_i32 = arith.constant 0 : i32
    return %arg0, %arg1 : i32, i32
  }
}

</mosaic_0001>

<llo_original>
// kernel: tpu_custom_call.1
$region0: #{tpu_custom_call.1}
  #allocation0 [shape = 'u32[]', space=smem, size = 0x4, offset = 0x4, fixed_abs, tag = 'smem constant byte address 0x4 - core index']
  #allocation1 [shape = 'u32[144,128]{1,0:T(1,128)}', space=vmem, size = 0x12000, scoped, tag = 'internal scratch']
  %s0 = inlined_call_operand.hbm [shape: f32[16,32], index: 0, kind: input, shape index: {}]
  %s1 = inlined_call_operand.hbm [shape: bf16[32,128], index: 1, kind: input, shape index: {}]
  %s2 = inlined_call_operand.vmem [shape: f32[1,128], index: 2, kind: input, shape index: {}]
  %s3 = inlined_call_operand.hbm [shape: f32[16,128], index: 3, kind: output, shape index: {}]
  %s4 = sld [smem:[#allocation0]]
  $region53: #{tpu_custom_call.1} parent=0
    _
  %s6 = ssub.s32 1, %s4
  %s7 = scalar_select 0, %s6, %s4
  $region1: #{tpu_custom_call.1} parent=0
    #allocation2 [shape = 'u8[8192]{0}', space=vmem, size = 0x2000, scoped, tag = 'input window, operand 0']
    #allocation3 [shape = 's32[2]{0}', space=sflag, size = 0x8, scoped, tag = 'scoped memory for tpu_custom_call.1']
    #allocation4 [shape = 's32[2]{0}', space=sflag, size = 0x8, scoped, tag = 'scoped memory for tpu_custom_call.1']
    #allocation5 [shape = 'u8[8192]{0}', space=vmem, size = 0x2000, scoped, tag = 'input window, operand 1, single buffered']
    #allocation6 [shape = 's32[1]{0}', space=sflag, size = 0x4, scoped, tag = 'scoped memory for tpu_custom_call.1']
    #allocation7 [shape = 'u8[8192]{0}', space=vmem, size = 0x2000, scoped, tag = 'output window, operand 0']
    %8 = vsyncpa [#allocation3], 0
    %s9 = scalar_lea.sflag [#allocation3], 1
    %10 = vsyncpa %s9, 0
    %11 = vsyncpa [#allocation6], 0
    %12 = vsyncpa [#allocation4], 0
    %s13 = scalar_lea.sflag [#allocation4], 1
    %14 = vsyncpa %s13, 0
    loop: start=0, step=1, limit=4
    $region2: #{tpu_custom_call.1} parent=1 // loop_pre_header
      _
    $region3: #{tpu_custom_call.1} parent=1 // loop_header
      %s16 = sphi 0, %s20
      %p17 = scmp.ge.s32.totalorder %s16, 4
      %s23 = sphi 0, %s35
      %s24 = sphi 0, %s31
      %s25 = sphi 0, %s23
      %s26 = sphi 0, %s24
      %s27 = sphi 0, %s25
      %s28 = sphi 0, %s26
      %s38 = sphi 0, %s40
      %s41 = sphi 0, %s38
      %s42 = sphi 0, %s41
      %s58 = sphi 0, %s42
      %s64 = sphi 0, %s66
      %s67 = sphi 0, %s64
      %s68 = sphi 0, %s67
      %s84 = sphi 0, %s68
      %s90 = sphi 0, %s92
      %s93 = sphi 0, %s90
      %s94 = sphi 0, %s93
      %s110 = sphi 0, %s94
      %s118 = sphi 0, %s120
      %s121 = sphi 0, %s118
      %s122 = sphi 0, %s121
      %s138 = sphi 0, %s122
    $region4: #{tpu_custom_call.1} parent=1 // loop_header_branch
      %19 = sbr.rel (%p17) target = $region8
    $region5: #{tpu_custom_call.1} parent=1 // loop_body
      %s21 = ssub.s32 %s16, 1
      %s22 = ssub.s32 %s16, 2
      %s29 = sadd.s32 1, %s24
      %p30 = scmp.ge.s32.totalorder %s29, 1
      %s31 = scalar_select %p30, 0, %s29
      %s32 = sadd.s32 1, %s23
      %s33 = scalar_select %p30, %s32, %s23
      %p34 = scmp.ge.s32.totalorder %s33, 2
      %s35 = scalar_select %p34, 0, %s33
      %s36 = ssub.s32 %s23, %s35
      %p37 = scmp.eq.s32.totalorder %s36, 0
      %s39 = sadd.s32 %s38, 1
      %s40 = scalar_select %p37, %s38, %s39
      %p43 = pneg %p37
      %p44 = scmp.eq.s32.totalorder %s16, 1
      %p45 = por %p43, %p44
      %p46 = scmp.ne.s32.totalorder %s38, %s41
      %p47 = scmp.eq.s32.totalorder %s16, 0
      %p48 = por %p46, %p47
      %p49 = scmp.ne.s32.totalorder %s38, %s41
      %p50 = scmp.eq.s32.totalorder %s21, 1
      %p51 = por %p49, %p50
      %p52 = scmp.ne.s32.totalorder %s41, %s42
      %p53 = scmp.eq.s32.totalorder %s21, 0
      %p54 = por %p52, %p53
      %p55 = scmp.ne.s32.totalorder %s41, %s42
      %p56 = scmp.eq.s32.totalorder %s22, 1
      %p57 = por %p55, %p56
      %p59 = scmp.ne.s32.totalorder %s42, %s58
      %p60 = scmp.eq.s32.totalorder %s22, 0
      %p61 = por %p59, %p60
      %s62 = ssub.s32 %s24, %s31
      %p63 = scmp.eq.s32.totalorder %s62, 0
      %s65 = sadd.s32 %s64, 1
      %s66 = scalar_select %p63, %s64, %s65
      %p69 = pneg %p63
      %p70 = scmp.eq.s32.totalorder %s16, 1
      %p71 = por %p69, %p70
      %p72 = scmp.ne.s32.totalorder %s64, %s67
      %p73 = scmp.eq.s32.totalorder %s16, 0
      %p74 = por %p72, %p73
      %p75 = scmp.ne.s32.totalorder %s64, %s67
      %p76 = scmp.eq.s32.totalorder %s21, 1
      %p77 = por %p75, %p76
      %p78 = scmp.ne.s32.totalorder %s67, %s68
      %p79 = scmp.eq.s32.totalorder %s21, 0
      %p80 = por %p78, %p79
      %p81 = scmp.ne.s32.totalorder %s67, %s68
      %p82 = scmp.eq.s32.totalorder %s22, 1
      %p83 = por %p81, %p82
      %p85 = scmp.ne.s32.totalorder %s68, %s84
      %p86 = scmp.eq.s32.totalorder %s22, 0
      %p87 = por %p85, %p86
      %s88 = ssub.s32 %s24, %s31
      %p89 = scmp.eq.s32.totalorder %s88, 0
      %s91 = sadd.s32 %s90, 1
      %s92 = scalar_select %p89, %s90, %s91
      %p95 = pneg %p89
      %p96 = scmp.eq.s32.totalorder %s16, 1
      %p97 = por %p95, %p96
      %p98 = scmp.ne.s32.totalorder %s90, %s93
      %p99 = scmp.eq.s32.totalorder %s16, 0
      %p100 = por %p98, %p99
      %p101 = scmp.ne.s32.totalorder %s90, %s93
      %p102 = scmp.eq.s32.totalorder %s21, 1
      %p103 = por %p101, %p102
      %p104 = scmp.ne.s32.totalorder %s93, %s94
      %p105 = scmp.eq.s32.totalorder %s21, 0
      %p106 = por %p104, %p105
      %p107 = scmp.ne.s32.totalorder %s93, %s94
      %p108 = scmp.eq.s32.totalorder %s22, 1
      %p109 = por %p107, %p108
      %p111 = scmp.ne.s32.totalorder %s94, %s110
      %p112 = scmp.eq.s32.totalorder %s22, 0
      %p113 = por %p111, %p112
      %s114 = ssub.s32 %s23, %s35
      %s115 = ssub.s32 %s24, %s31
      %s116 = sor.u32 %s114, %s115
      %p117 = scmp.eq.s32.totalorder %s116, 0
      %s119 = sadd.s32 %s118, 1
      %s120 = scalar_select %p117, %s118, %s119
      %p123 = pneg %p117
      %p124 = scmp.eq.s32.totalorder %s16, 1
      %p125 = por %p123, %p124
      %p126 = scmp.ne.s32.totalorder %s118, %s121
      %p127 = scmp.eq.s32.totalorder %s16, 0
      %p128 = por %p126, %p127
      %p129 = scmp.ne.s32.totalorder %s118, %s121
      %p130 = scmp.eq.s32.totalorder %s21, 1
      %p131 = por %p129, %p130
      %p132 = scmp.ne.s32.totalorder %s121, %s122
      %p133 = scmp.eq.s32.totalorder %s21, 0
      %p134 = por %p132, %p133
      %p135 = scmp.ne.s32.totalorder %s121, %s122
      %p136 = scmp.eq.s32.totalorder %s22, 1
      %p137 = por %p135, %p136
      %p139 = scmp.ne.s32.totalorder %s122, %s138
      %p140 = scmp.eq.s32.totalorder %s22, 0
      %p141 = por %p139, %p140
      %p142 = scmp.le.s32.totalorder 1, %s16
      %p143 = scmp.lt.s32.totalorder %s16, 3
      %p144 = pnand %p142, %p143
      %p145 = pneg %p144
      // Predicated region
      $region9: #{tpu_custom_call.1} parent=5 // pred_check
        _
      $region10: #{tpu_custom_call.1} parent=5 // pred_check_branch
        %147 = sbr.rel (%p144) target = $region12
      $region11: #{tpu_custom_call.1} parent=5 // pred_region
        %s148 = ssub.s32 %s16, 1
        // Predicated region
        $region13: #{tpu_custom_call.1} parent=11 // pred_check
          %p149 = pneg %p80
        $region14: #{tpu_custom_call.1} parent=11 // pred_check_branch
          %151 = sbr.rel (%p149) target = $region16
        $region15: #{tpu_custom_call.1} parent=11 // pred_region
          %s153 = ssub.s32 256, 256
          %154 = vsyncadd [#allocation6], %s153
          %s155 = smul.addr %s26, 64
          %s156 = scalar_lea.hbm %s1, %s155
          %s157 = sshll.u32 [#allocation5], 4
          %s158 = int_to_ptr.vmem [resolvable:$true] %s157
          %163 = dma.hbm_to_vmem [thread:$0]  %s156, 256, %s158, [#allocation6], 64, 64, 4
        $region16: #{tpu_custom_call.1} parent=11 // pred_fallthru
          _
        // Predicated region
        $region17: #{tpu_custom_call.1} parent=11 // pred_check
          %p164 = pneg %p106
        $region18: #{tpu_custom_call.1} parent=11 // pred_check_branch
          %166 = sbr.rel (%p164) target = $region20
        $region19: #{tpu_custom_call.1} parent=11 // pred_region
          %p167 = scmp.lt.s32.totalorder %s26, 0
          %s168 = scalar_select %p167, %s26, 0
          %s169 = scalar_lea.vmem %s2, %s168
        $region20: #{tpu_custom_call.1} parent=11 // pred_fallthru
          _
      $region12: #{tpu_custom_call.1} parent=5 // pred_fallthru
        _
      %p170 = scmp.lt.s32.totalorder %s16, 2
      // Predicated region
      $region21: #{tpu_custom_call.1} parent=5 // pred_check
        %p171 = pneg %p170
      $region22: #{tpu_custom_call.1} parent=5 // pred_check_branch
        %173 = sbr.rel (%p171) target = $region24
      $region23: #{tpu_custom_call.1} parent=5 // pred_region
        // Predicated region
        $region25: #{tpu_custom_call.1} parent=23 // pred_check
          %p174 = pneg %p48
        $region26: #{tpu_custom_call.1} parent=23 // pred_check_branch
          %176 = sbr.rel (%p174) target = $region28
        $region27: #{tpu_custom_call.1} parent=23 // pred_region
          %s177 = sand.u32 %s38, 1
          %s178 = scalar_lea.sflag [#allocation3], %s177
          %s179 = sand.u32 %s38, 1
          %s180 = smul.addr %s179, 8
          %s181 = scalar_lea.vmem [#allocation2], %s180
          %s183 = ssub.s32 128, 128
          %184 = vsyncadd %s178, %s183
          %s185 = smul.addr %s23, 128
          %s186 = scalar_lea.hbm %s0, %s185
          %s188 = sshll.u32 %s181, 4
          %s189 = int_to_ptr.vmem [resolvable:$true] %s188
          %191 = dma.hbm_to_vmem [thread:$0]  %s186, 128, %s189, %s178
        $region28: #{tpu_custom_call.1} parent=23 // pred_fallthru
          _
      $region24: #{tpu_custom_call.1} parent=5 // pred_fallthru
        _
      %p192 = scmp.le.s32.totalorder 1, %s16
      %p193 = scmp.lt.s32.totalorder %s16, 3
      %p194 = pnand %p192, %p193
      %p195 = pneg %p194
      // Predicated region
      $region29: #{tpu_custom_call.1} parent=5 // pred_check
        _
      $region30: #{tpu_custom_call.1} parent=5 // pred_check_branch
        %197 = sbr.rel (%p194) target = $region32
      $region31: #{tpu_custom_call.1} parent=5 // pred_region
        %s198 = ssub.s32 %s16, 1
        %s199 = sand.u32 %s41, 1
        %s200 = scalar_lea.sflag [#allocation3], %s199
        %s201 = sand.u32 %s41, 1
        %s202 = smul.addr %s201, 8
        %s203 = scalar_lea.vmem [#allocation2], %s202
        // Predicated region
        $region33: #{tpu_custom_call.1} parent=31 // pred_check
          %p204 = pneg %p54
        $region34: #{tpu_custom_call.1} parent=31 // pred_check_branch
          %206 = sbr.rel (%p204) target = $region36
        $region35: #{tpu_custom_call.1} parent=31 // pred_region
          %207 = dma.done %s200, 128
        $region36: #{tpu_custom_call.1} parent=31 // pred_fallthru
          _
        // Predicated region
        $region37: #{tpu_custom_call.1} parent=31 // pred_check
          %p208 = pneg %p80
        $region38: #{tpu_custom_call.1} parent=31 // pred_check_branch
          %210 = sbr.rel (%p208) target = $region40
        $region39: #{tpu_custom_call.1} parent=31 // pred_region
          %211 = dma.done [#allocation6], 256
        $region40: #{tpu_custom_call.1} parent=31 // pred_fallthru
          _
        %s212 = sand.u32 %s41, 1
        %s213 = scalar_lea.sflag [#allocation3], %s212
        %s214 = sand.u32 %s41, 1
        %s215 = smul.addr %s214, 8
        %s216 = scalar_lea.vmem [#allocation2], %s215
        %p217 = pneg %p54
        %p218 = pneg %p51
        %p219 = pneg %p80
        %p220 = pneg %p77
        %p221 = scmp.lt.s32.totalorder %s26, 0
        %s222 = scalar_select %p221, %s26, 0
        %s223 = scalar_lea.vmem %s2, %s222
        %p224 = pneg %p106
        %p225 = pneg %p103
        %p226 = pneg %p134
        %p227 = pneg %p131
        %s228 = sand.u32 %s121, 1
        %s229 = scalar_lea.sflag [#allocation4], %s228
        %s230 = sand.u32 %s121, 1
        %s231 = smul.addr %s230, 8
        %s232 = scalar_lea.vmem [#allocation7], %s231
        %p233 = scmp.lt.s32.totalorder %s26, 0
        %s234 = scalar_select %p233, %s26, 0
        %s235 = scalar_lea.vmem %s2, %s234
        %v237 = vld [vmem:[%s203] sm:$0xff]
        %v238 = vpack.c.bf16 %v237, %v237
        %v239 = vld [vmem:[#allocation5] sm:$0xf]
        %v240 = vld [vmem:[#allocation5 + $0x4] sm:$0xf]
        %v241 = vld [vmem:[#allocation5 + $0x8] sm:$0xf]
        %v242 = vld [vmem:[#allocation5 + $0xc] sm:$0xf]
        %v243 = vld [vmem:[%s235] sm:$0x1]
        %v245 = vlaneseq
        %v246 = vshrl.u32 %v245, 7
        %v247 = vsub.s32 0, %v246
        %v248 = vrot.slane %v243, %v247
        %v254 = vunpack.c.l.b16 %v239
        %v255 = vunpack.c.l.b16 %v240
        %v256 = vunpack.c.l.b16 %v241
        %v257 = vunpack.c.l.b16 %v242
        %v258 = vpack.c.b16 %v255, %v254
        %v259 = vpack.c.b16 %v257, %v256
        %vm262 = vcmask 261120
        %v264 = vsel %vm262, %v238, 0
        %266 = vmatprep.subr.bf16.mxu0 0
        %267 = vmatpush1.bf16.msra.mxu0 0
        %268 = vmatprep.subr.bf16.mxu0 0
        %269 = vmatpush1.bf16.msra.mxu0 0
        %270 = vmatprep.subr.bf16.mxu0 0
        %271 = vmatpush1.bf16.msra.mxu0 0
        %272 = vmatprep.subr.bf16.mxu0 0
        %273 = vmatpush1.bf16.msra.mxu0 0
        %274 = vmatprep.subr.bf16.mxu0 0
        %275 = vmatpush1.bf16.msra.mxu0 0
        %276 = vmatprep.subr.bf16.mxu0 0
        %277 = vmatpush1.bf16.msra.mxu0 0
        %278 = vmatprep.subr.bf16.mxu0 0
        %279 = vmatpush1.bf16.msra.mxu0 %v259
        %280 = vmatprep.subr.bf16.mxu0 0
        %281 = vmatpush1.bf16.msra.mxu0 %v258
        %282 = vmatprep.subr.bf16.mxu0 0
        %283 = vmatpush2.bf16.msra.mxu0 0
        %284 = vmatprep.subr.bf16.mxu0 0
        %285 = vmatpush2.bf16.msra.mxu0 0
        %286 = vmatprep.subr.bf16.mxu0 0
        %287 = vmatpush2.bf16.msra.mxu0 0
        %288 = vmatprep.subr.bf16.mxu0 0
        %289 = vmatpush2.bf16.msra.mxu0 0
        %290 = vmatprep.subr.bf16.mxu0 0
        %291 = vmatpush2.bf16.msra.mxu0 0
        %292 = vmatprep.subr.bf16.mxu0 0
        %293 = vmatpush2.bf16.msra.mxu0 0
        %294 = vmatprep.subr.bf16.mxu0 0
        %295 = vmatpush2.bf16.msra.mxu0 0
        %296 = vmatprep.subr.bf16.mxu0 0
        %297 = vmatpush2.bf16.msra.mxu0 0
        %298 = vmatprep.mubr.bf16.mxu0 0
        %299 = vmatmul.mubr.bf16.gmra.mxu0 %v264
        %v300 = vpop.f32.mrf.mxu0
        %v301 = vadd.f32 %v248, %v300
        %v302 = vpop.f32.mrf.mxu0
        %v303 = vpop.f32.mrf.mxu0
        %v304 = vpop.f32.mrf.mxu0
        %305 = vdwg.mxu0
        %306 = vst [vmem:[%s232] sm:$0xff] %v301
        %s307 = sand.u32 %s121, 1
        %s308 = scalar_lea.sflag [#allocation4], %s307
        %s309 = sand.u32 %s121, 1
        %s310 = smul.addr %s309, 8
        %s311 = scalar_lea.vmem [#allocation7], %s310
        // Predicated region
        $region41: #{tpu_custom_call.1} parent=31 // pred_check
          %p312 = pneg %p131
        $region42: #{tpu_custom_call.1} parent=31 // pred_check_branch
          %314 = sbr.rel (%p312) target = $region44
        $region43: #{tpu_custom_call.1} parent=31 // pred_region
          %s316 = ssub.s32 128, 128
          %317 = vsyncadd %s308, %s316
          %s318 = sadd.s32 %s26, %s25
          %s319 = smul.addr %s318, 128
          %s320 = scalar_lea.hbm %s3, %s319
          %s322 = sshll.u32 %s311, 4
          %s323 = int_to_ptr.vmem [resolvable:$true] %s322
          %325 = dma.vmem_to_hbm [thread:$0]  %s323, 128, %s320, %s308
        $region44: #{tpu_custom_call.1} parent=31 // pred_fallthru
          _
      $region32: #{tpu_custom_call.1} parent=5 // pred_fallthru
        _
      %p326 = scmp.le.s32.totalorder 2, %s16
      // Predicated region
      $region45: #{tpu_custom_call.1} parent=5 // pred_check
        %p327 = pneg %p326
      $region46: #{tpu_custom_call.1} parent=5 // pred_check_branch
        %329 = sbr.rel (%p327) target = $region48
      $region47: #{tpu_custom_call.1} parent=5 // pred_region
        %s330 = ssub.s32 %s16, 2
        // Predicated region
        $region49: #{tpu_custom_call.1} parent=47 // pred_check
          %p331 = pneg %p137
        $region50: #{tpu_custom_call.1} parent=47 // pred_check_branch
          %333 = sbr.rel (%p331) target = $region52
        $region51: #{tpu_custom_call.1} parent=47 // pred_region
          %s334 = sand.u32 %s122, 1
          %s335 = scalar_lea.sflag [#allocation4], %s334
          %s336 = sand.u32 %s122, 1
          %s337 = smul.addr %s336, 8
          %s338 = scalar_lea.vmem [#allocation7], %s337
          %339 = dma.done %s335, 128
        $region52: #{tpu_custom_call.1} parent=47 // pred_fallthru
          _
      $region48: #{tpu_custom_call.1} parent=5 // pred_fallthru
        _
    $region6: #{tpu_custom_call.1} parent=1 // loop_footer
      %s20 = sadd.s32 1, %s16
    $region7: #{tpu_custom_call.1} parent=1 // loop_footer_branch
      %15 = sbr.rel target = $region3
    $region8: #{tpu_custom_call.1} parent=1 // loop_exit
      _
    %340 = vsyncpa [#allocation3], 1
    %s341 = scalar_lea.sflag [#allocation3], 1
    %342 = vsyncpa %s341, 1
    %343 = vsyncpa [#allocation6], 1
    %344 = vsyncpa [#allocation4], 1
    %s345 = scalar_lea.sflag [#allocation4], 1
    %346 = vsyncpa %s345, 1

</llo_original>
